<compile_context>
chip_gen: v5e
topology: v5e:2x2
jax: 0.10.0
libtpu: 0.0.40
codegen_flags: <defaults>
</compile_context>

<pallas_src>
import functools
import math

import jax
import jax.numpy as jnp
from jax.experimental import pallas as pl
from jax.experimental.pallas import tpu as pltpu


def _round_up(x, m):
    return ((x + m - 1) // m) * m


def _pick_unroll(tgt_len, cap=4):
    for u in range(min(cap, tgt_len), 0, -1):
        if tgt_len % u == 0:
            return u
    return 1


# ----------------------------------------------------------------------------
# Kernel 1: K/V projection of the encoder output (runs once per forward)
# ----------------------------------------------------------------------------
def _kv_proj_kernel(enc_ref, wkv_ref, bkv_ref, k_ref, v_ref, *, h_dim):
    kv = jnp.dot(enc_ref[...].astype(jnp.bfloat16), wkv_ref[...],
                 preferred_element_type=jnp.float32) + bkv_ref[...]
    k_ref[...] = kv[:, :h_dim].astype(jnp.bfloat16)
    v_ref[...] = kv[:, h_dim:].astype(jnp.bfloat16)


def kv_projection(enc_flat, wkv, bkv, h_dim, row_block=512):
    n, h_in = enc_flat.shape
    # row-tiled blocked matmul; falls back to a single full-row block when the
    # row count does not split evenly (toy sizes).  TODO(synk): also tile the
    # 2H column dim + contraction dim for production H.
    tr = row_block if (n > row_block and n % row_block == 0) else n
    const1 = pl.Buffered(1)
    kernel = functools.partial(_kv_proj_kernel, h_dim=h_dim)
    return pl.pallas_call(
        kernel,
        out_shape=(jax.ShapeDtypeStruct((n, h_dim), jnp.bfloat16),
                   jax.ShapeDtypeStruct((n, h_dim), jnp.bfloat16)),
        grid=(n // tr,),
        in_specs=[pl.BlockSpec((tr, h_in), lambda i: (i, 0)),
                  pl.BlockSpec(wkv.shape, lambda i: (0, 0), pipeline_mode=const1),
                  pl.BlockSpec(bkv.shape, lambda i: (0, 0), pipeline_mode=const1)],
        out_specs=(pl.BlockSpec((tr, h_dim), lambda i: (i, 0)),
                   pl.BlockSpec((tr, h_dim), lambda i: (i, 0))),
        compiler_params=pltpu.CompilerParams(
            dimension_semantics=("parallel",)),
    )(enc_flat, wkv, bkv)


# ----------------------------------------------------------------------------
# Kernel 2: the full autoregressive decode loop as a single grid
# ----------------------------------------------------------------------------
def _decode_step_kernel(
    k_ref, v_ref, h0_ref, emb_ref,
    wq_ref, bq_ref,
    wih_ref, bih_ref, whh_ref, bhh_ref,
    wl_ref, bl_ref,
    out_ref,
    h_s, x_s, idx_s,
    *, h_dim, batch, unroll):
    f32 = jnp.float32
    bf16 = jnp.bfloat16
    t = pl.program_id(0)

    # ---- one-time init: hidden = enc[:, -1, :], token embedding = <sos> (id 1)
    @pl.when(t == 0)
    def _init():
        h_s[...] = h0_ref[...]
        sos = emb_ref[1]                                    # (1, E)
        x_s[...] = jnp.broadcast_to(sos, (batch, sos.shape[-1]))

    k = k_ref[...]                                          # (B, S, H) bf16
    v = v_ref[...]                                          # (B, S, H) bf16

    # Fully unrolled U-step inner loop (amortizes per-grid-step overhead).
    for u in range(unroll):
        h_prev = h_s[...]                                   # (B, H) f32
        x_emb = x_s[...]                                    # (B, E) f32

        # ---- attention (1/sqrt(H) folded into WQ/bQ; contractions on the MXU)
        q = (jnp.dot(h_prev.astype(bf16), wq_ref[...],
                     preferred_element_type=f32) + bq_ref[...])      # (B, H)
        score = jnp.einsum('bqh,bsh->bqs', q[:, None, :].astype(bf16), k,
                           preferred_element_type=f32)               # (B, 1, S)
        score = score - jnp.max(score, axis=-1, keepdims=True)
        p = jnp.exp(score)
        attn = p * pl.reciprocal(jnp.sum(p, axis=-1, keepdims=True), approx=True)
        ctx = jnp.einsum('bqs,bsh->bqh', attn.astype(bf16), v,
                         preferred_element_type=f32)[:, 0, :]        # (B, H)

        # ---- GRUCell(input=x_emb, hidden=ctx); 6 gate matmuls fused into 2
        gi = (jnp.dot(x_emb.astype(bf16), wih_ref[...],
                      preferred_element_type=f32) + bih_ref[...])    # (B, 3H)
        gh = (jnp.dot(ctx.astype(bf16), whh_ref[...],
                      preferred_element_type=f32) + bhh_ref[...])    # (B, 3H)
        i_r, i_z, i_n = gi[:, :h_dim], gi[:, h_dim:2 * h_dim], gi[:, 2 * h_dim:]
        h_r, h_z, h_n = gh[:, :h_dim], gh[:, h_dim:2 * h_dim], gh[:, 2 * h_dim:]
        r = jax.nn.sigmoid(i_r + h_r)
        z = jax.nn.sigmoid(i_z + h_z)
        n = jnp.tanh(i_n + r * h_n)
        h_new = (1.0 - z) * n + z * ctx                              # (B, H)

        # ---- vocab projection (lane-padded vocab; padded bias = -1e30)
        logits = (jnp.dot(h_new.astype(bf16), wl_ref[...],
                          preferred_element_type=f32) + bl_ref[...])  # (B, Vp)
        out_ref[u] = logits

        # ---- greedy feedback: argmax -> scalar row ids -> embedding row gather
        vp = logits.shape[-1]
        col = jax.lax.broadcasted_iota(jnp.int32, logits.shape, 1)
        mx = jnp.max(logits, axis=-1, keepdims=True)
        idx_s[...] = jnp.min(jnp.where(logits == mx, col, vp),
                             axis=-1, keepdims=True)                  # (B, 1) int32
        for b in range(batch):
            nxt = idx_s[b, 0]                                         # scalar token id
            x_s[pl.ds(b, 1), :] = emb_ref[nxt]                        # (1, E) row
        h_s[...] = h_new


def _const_spec(a):
    nd = a.ndim
    return pl.BlockSpec(a.shape, lambda t, _nd=nd: (0,) * _nd,
                        pipeline_mode=pl.Buffered(1))


def decode_loop(k, v, h0, params, tgt_len):
    Bp, S, H = k.shape
    E = params['emb_p'].shape[-1]
    Vp = params['wl_p'].shape[1]
    U = _pick_unroll(tgt_len)

    args = (
        k, v, h0, params['emb_p'],
        params['wq'], params['bq'],
        params['w_ih'], params['b_ih'], params['w_hh'], params['b_hh'],
        params['wl_p'], params['bl_p'],
    )
    kernel = functools.partial(_decode_step_kernel, h_dim=H, batch=Bp, unroll=U)

    # VMEM budget from the actual resident set; 48 MiB cap leaves headroom under
    # v7x's 64 MiB physical VMEM (v5e/v6e have 128 MiB).
    resident = sum(int(a.size) * a.dtype.itemsize for a in args)
    out_bytes = U * Bp * Vp * 4 * 2                    # double-buffered out tile
    scratch_bytes = Bp * (H + E + 1) * 4
    vmem_limit = int(min(max(resident + out_bytes + scratch_bytes + (8 << 20),
                             16 << 20), 48 << 20))

    return pl.pallas_call(
        kernel,
        out_shape=jax.ShapeDtypeStruct((tgt_len, Bp, Vp), jnp.float32),
        grid=(tgt_len // U,),
        in_specs=[_const_spec(a) for a in args],
        out_specs=pl.BlockSpec((U, Bp, Vp), lambda t: (t, 0, 0)),
        scratch_shapes=[pltpu.VMEM((Bp, H), jnp.float32),   # hidden-state carry
                        pltpu.VMEM((Bp, E), jnp.float32),   # current embedding
                        pltpu.VMEM((Bp, 1), jnp.int32)],    # argmax token ids
        compiler_params=pltpu.CompilerParams(
            dimension_semantics=("arbitrary",),
            vmem_limit_bytes=vmem_limit),
    )(*args)


# ----------------------------------------------------------------------------
# Decoder.forward (wrapper glue)
# ----------------------------------------------------------------------------
def decoder_forward(params, encoder_output, tgt_len, tgt_vocab_size, target_seq=None):
    B, S, H = encoder_output.shape
    Bp = _round_up(B, 8)     # sublane-pad the batch: unmasked stores, >=8 MXU rows
    enc_p = jnp.pad(encoder_output, ((0, Bp - B), (0, 0), (0, 0)))

    # K/V projections hoisted out of the decode loop; two direct bf16 outputs.
    k_flat, v_flat = kv_projection(enc_p.reshape(Bp * S, H),
                                   params['wkv'], params['bkv'], H)
    k = k_flat.reshape(Bp, S, H)
    v = v_flat.reshape(Bp, S, H)
    h0 = enc_p[:, -1, :]                                    # initial hidden state

    # target_seq is None -> deterministic greedy-feedback path
    logits_p = decode_loop(k, v, h0, params, tgt_len)       # (tgt_len, Bp, Vp)
    out = jnp.transpose(logits_p, (1, 0, 2))                # (Bp, tgt_len, Vp)
    return out[:B, :, :tgt_vocab_size]


# ----------------------------------------------------------------------------
# Deterministic parameter init (shapes from Decoder.__init__, packed / padded)
# ----------------------------------------------------------------------------
def init_params(key, tgt_vocab_size, emb_dim, h_dim):
    Vp = _round_up(tgt_vocab_size, 128)      # lane-dense padded vocab
    bf16 = jnp.bfloat16
    ks = jax.random.split(key, 16)
    it = iter(range(16))

    def u(shape, bound):
        return jax.random.uniform(ks[next(it)], shape, jnp.float32, -bound, bound)

    p = {}
    # Embedding table: (Vp, 1, E) so the in-kernel gather indexes a leading,
    # untiled dim (pure address offset).  Kept f32 (tiny here; at production
    # sizes it lives in HBM and rows are DMA'd per step).
    emb = jax.random.normal(ks[next(it)], (tgt_vocab_size, emb_dim), jnp.float32)
    p['emb_p'] = (jnp.zeros((Vp, 1, emb_dim), jnp.float32)
                  .at[:tgt_vocab_size, 0, :].set(emb))

    lb = 1.0 / math.sqrt(h_dim)
    scale = 1.0 / math.sqrt(h_dim)          # attention scale folded into WQ/bQ
    # attention: WQ separate (scale folded, bf16), WK/WV fused into (H, 2H) bf16
    wq, bq = u((h_dim, h_dim), lb), u((1, h_dim), lb)
    p['wq'] = (wq * scale).astype(bf16)
    p['bq'] = bq * scale
    wk, bk = u((h_dim, h_dim), lb), u((1, h_dim), lb)
    wv, bv = u((h_dim, h_dim), lb), u((1, h_dim), lb)
    p['wkv'] = jnp.concatenate([wk, wv], axis=1).astype(bf16)
    p['bkv'] = jnp.concatenate([bk, bv], axis=1)
    # GRUCell gates packed (r|z|n), bf16 weights / f32 biases
    p['w_ih'] = u((emb_dim, 3 * h_dim), lb).astype(bf16)
    p['b_ih'] = u((1, 3 * h_dim), lb)
    p['w_hh'] = u((h_dim, 3 * h_dim), lb).astype(bf16)
    p['b_hh'] = u((1, 3 * h_dim), lb)
    # output projection, lane-padded bf16 weight; padded bias = -1e30 so padded
    # columns can never win the in-kernel argmax
    wl, bl = u((h_dim, tgt_vocab_size), lb), u((1, tgt_vocab_size), lb)
    p['wl_p'] = (jnp.zeros((h_dim, Vp), jnp.float32)
                 .at[:, :tgt_vocab_size].set(wl)).astype(bf16)
    p['bl_p'] = jnp.full((1, Vp), -1e30, jnp.float32).at[:, :tgt_vocab_size].set(bl)
    return p


if __name__ == "__main__":
    B, S = 2, 8
    tgt_vocab_size, emb_dim, h_dim, tgt_len = 24, 16, 32, 6

    key = jax.random.PRNGKey(0)
    k_params, k_enc = jax.random.split(key)
    params = init_params(k_params, tgt_vocab_size, emb_dim, h_dim)
    encoder_output = jax.random.normal(k_enc, (B, S, h_dim), jnp.float32)

    out = decoder_forward(params, encoder_output, tgt_len, tgt_vocab_size,
                          target_seq=None)
    out = jax.block_until_ready(out)

    assert out.shape == (B, tgt_len, tgt_vocab_size), out.shape
    assert bool(jnp.all(jnp.isfinite(out)))
    print("KERNEL_OK")
</pallas_src>

<mosaic_0001>
module attributes {stable_mosaic.version = 11 : i64} {
  func.func @_kv_proj_kernel(%arg0: i32, %arg1: memref<64x32xf32, #tpu.memory_space<vmem>>, %arg2: memref<32x64xbf16, #tpu.memory_space<vmem>>, %arg3: memref<1x64xf32, #tpu.memory_space<vmem>>, %arg4: memref<64x32xbf16, #tpu.memory_space<vmem>>, %arg5: memref<64x32xbf16, #tpu.memory_space<vmem>>) attributes {dimension_semantics = [#tpu.dimension_semantics<parallel>], iteration_bounds = array<i64: 1>, scalar_prefetch = 0 : i64, scratch_operands = 0 : i64, tpu.core_type = #tpu.core_type<tc>, window_params = [{transform_indices = @transform_0, window_bounds = array<i64: 64, 32>}, {pipeline_mode = #tpu.pipeline_mode<synchronous>, transform_indices = @transform_1, window_bounds = array<i64: 32, 64>}, {pipeline_mode = #tpu.pipeline_mode<synchronous>, transform_indices = @transform_2, window_bounds = array<i64: 1, 64>}, {transform_indices = @transform_3, window_bounds = array<i64: 64, 32>}, {transform_indices = @transform_4, window_bounds = array<i64: 64, 32>}]} {
    %c0 = arith.constant 0 : index
    %c0_0 = arith.constant 0 : index
    %0 = vector.load %arg1[%c0, %c0_0] : memref<64x32xf32, #tpu.memory_space<vmem>>, vector<64x32xf32>
    %1 = arith.truncf %0 : vector<64x32xf32> to vector<64x32xbf16>
    %c0_1 = arith.constant 0 : index
    %c0_2 = arith.constant 0 : index
    %2 = vector.load %arg2[%c0_1, %c0_2] : memref<32x64xbf16, #tpu.memory_space<vmem>>, vector<32x64xbf16>
    %cst = arith.constant dense<0.000000e+00> : vector<64x64xf32>
    %3 = tpu.matmul %1, %2, %cst {dimension_numbers = #tpu.dot_dimension_numbers<[1], [0], [0], [1], [0, 0, 1, 1], [], []>} : vector<64x32xbf16>, vector<32x64xbf16>, vector<64x64xf32> -> vector<64x64xf32>
    %c0_3 = arith.constant 0 : index
    %c0_4 = arith.constant 0 : index
    %4 = vector.load %arg3[%c0_3, %c0_4] : memref<1x64xf32, #tpu.memory_space<vmem>>, vector<1x64xf32>
    %5 = vector.broadcast %4 : vector<1x64xf32> to vector<64x64xf32>
    %6 = arith.addf %3, %5 : vector<64x64xf32>
    %7 = vector.extract_strided_slice %6 {offsets = [0, 0], sizes = [64, 32], strides = [1, 1]} : vector<64x64xf32> to vector<64x32xf32>
    %8 = arith.truncf %7 : vector<64x32xf32> to vector<64x32xbf16>
    %c0_5 = arith.constant 0 : index
    %c0_6 = arith.constant 0 : index
    %9 = vector.load %arg4[%c0_5, %c0_6] : memref<64x32xbf16, #tpu.memory_space<vmem>>, vector<64x32xbf16>
    tpu.vector_store %arg4[%c0_5, %c0_6], %8 {strides = array<i32>} : memref<64x32xbf16, #tpu.memory_space<vmem>>, vector<64x32xbf16>,
    %10 = vector.extract_strided_slice %6 {offsets = [0, 32], sizes = [64, 32], strides = [1, 1]} : vector<64x64xf32> to vector<64x32xf32>
    %11 = arith.truncf %10 : vector<64x32xf32> to vector<64x32xbf16>
    %c0_7 = arith.constant 0 : index
    %c0_8 = arith.constant 0 : index
    %12 = vector.load %arg5[%c0_7, %c0_8] : memref<64x32xbf16, #tpu.memory_space<vmem>>, vector<64x32xbf16>
    tpu.vector_store %arg5[%c0_7, %c0_8], %11 {strides = array<i32>} : memref<64x32xbf16, #tpu.memory_space<vmem>>, vector<64x32xbf16>,
    return
  }
  func.func @transform_0(%arg0: i32) -> (i32, i32) {
    %c0_i32 = arith.constant 0 : i32
    %c0_i32_0 = arith.constant 0 : i32
    return %arg0, %c0_i32 : i32, i32
  }
  func.func @transform_1(%arg0: i32) -> (i32, i32) {
    %c0_i32 = arith.constant 0 : i32
    %c0_i32_0 = arith.constant 0 : i32
    %c0_i32_1 = arith.constant 0 : i32
    return %c0_i32, %c0_i32_0 : i32, i32
  }
  func.func @transform_2(%arg0: i32) -> (i32, i32) {
    %c0_i32 = arith.constant 0 : i32
    %c0_i32_0 = arith.constant 0 : i32
    %c0_i32_1 = arith.constant 0 : i32
    return %c0_i32, %c0_i32_0 : i32, i32
  }
  func.func @transform_3(%arg0: i32) -> (i32, i32) {
    %c0_i32 = arith.constant 0 : i32
    %c0_i32_0 = arith.constant 0 : i32
    return %arg0, %c0_i32 : i32, i32
  }
  func.func @transform_4(%arg0: i32) -> (i32, i32) {
    %c0_i32 = arith.constant 0 : i32
    %c0_i32_0 = arith.constant 0 : i32
    return %arg0, %c0_i32 : i32, i32
  }
}

</mosaic_0001>

<llo_original>
// kernel: tpu_custom_call.1
$region0: #{tpu_custom_call.1}
  #allocation0 [shape = 'u32[]', space=smem, size = 0x4, offset = 0x4, fixed_abs, tag = 'smem constant byte address 0x4 - core index']
  #allocation1 [shape = 'u32[72,128]{1,0:T(1,128)}', space=vmem, size = 0x9000, scoped, tag = 'internal scratch']
  %s0 = inlined_call_operand.vmem [shape: f32[64,32], index: 0, kind: input, shape index: {}]
  %s1 = inlined_call_operand.vmem [shape: bf16[32,64], index: 1, kind: input, shape index: {}]
  %s2 = inlined_call_operand.vmem [shape: f32[1,64], index: 2, kind: input, shape index: {}]
  %s3 = inlined_call_operand.vmem [shape: bf16[64,32], index: 3, kind: output, shape index: {0}]
  %s4 = inlined_call_operand.vmem [shape: bf16[64,32], index: 4, kind: output, shape index: {1}]
  %5 = xla_tuple %s3, %s4
  %s6 = sld [smem:[#allocation0]]
  $region30: #{tpu_custom_call.1} parent=0
    _
  %s8 = ssub.s32 1, %s6
  %s9 = scalar_select 0, %s8, %s6
  // Predicated region
  $region2: #{tpu_custom_call.1} parent=0 // pred_check
    _
  $region3: #{tpu_custom_call.1} parent=0 // pred_check_branch
    %11 = sbr.rel (0) target = $region5
  $region4: #{tpu_custom_call.1} parent=0 // pred_region
    _
  $region5: #{tpu_custom_call.1} parent=0 // pred_fallthru
    _
  // Predicated region
  $region6: #{tpu_custom_call.1} parent=0 // pred_check
    _
  $region7: #{tpu_custom_call.1} parent=0 // pred_check_branch
    %13 = sbr.rel (0) target = $region9
  $region8: #{tpu_custom_call.1} parent=0 // pred_region
    _
  $region9: #{tpu_custom_call.1} parent=0 // pred_fallthru
    _
  // Predicated region
  $region10: #{tpu_custom_call.1} parent=0 // pred_check
    _
  $region11: #{tpu_custom_call.1} parent=0 // pred_check_branch
    %15 = sbr.rel (0) target = $region13
  $region12: #{tpu_custom_call.1} parent=0 // pred_region
    _
  $region13: #{tpu_custom_call.1} parent=0 // pred_fallthru
    _
  %v17 = vld [vmem:[%s0] sm:$0xff]
  %v18 = vld [vmem:[%s0 + $0x8] sm:$0xff]
  %v19 = vld [vmem:[%s0 + $0x10] sm:$0xff]
  %v20 = vld [vmem:[%s0 + $0x18] sm:$0xff]
  %v21 = vld [vmem:[%s0 + $0x20] sm:$0xff]
  %v22 = vld [vmem:[%s0 + $0x28] sm:$0xff]
  %v23 = vld [vmem:[%s0 + $0x30] sm:$0xff]
  %v24 = vld [vmem:[%s0 + $0x38] sm:$0xff]
  %v25 = vpack.c.bf16 %v18, %v17
  %v26 = vpack.c.bf16 %v20, %v19
  %v27 = vpack.c.bf16 %v22, %v21
  %v28 = vpack.c.bf16 %v24, %v23
  %v29 = vld [vmem:[%s1] sm:$0xf]
  %v30 = vld [vmem:[%s1 + $0x4] sm:$0xf]
  %v31 = vld [vmem:[%s1 + $0x8] sm:$0xf]
  %v32 = vld [vmem:[%s1 + $0xc] sm:$0xf]
  %v33 = vld [vmem:[%s2] sm:$0x1]
  %v35 = vperm.slane %v33, 0
  %v41 = vunpack.c.l.b16 %v29
  %v42 = vunpack.c.l.b16 %v30
  %v43 = vunpack.c.l.b16 %v31
  %v44 = vunpack.c.l.b16 %v32
  %v45 = vpack.c.b16 %v42, %v41
  %v46 = vpack.c.b16 %v44, %v43
  %vm49 = vcmask 261120
  %v51 = vsel %vm49, %v25, 0
  %v54 = vsel %vm49, %v26, 0
  %v57 = vsel %vm49, %v27, 0
  %v60 = vsel %vm49, %v28, 0
  %62 = vmatpush.bf16.msra.mxu0 0
  %63 = vmatpush.bf16.msra.mxu0 0
  %64 = vmatpush.bf16.msra.mxu0 0
  %65 = vmatpush.bf16.msra.mxu0 0
  %66 = vmatpush.bf16.msra.mxu0 0
  %67 = vmatpush.bf16.msra.mxu0 0
  %68 = vmatpush.bf16.msra.mxu0 %v46
  %69 = vmatpush.bf16.msra.mxu0 %v45
  %70 = vmatmul.bf16.gmra.mxu0 %v51
  %v71 = vpop.f32.mrf.mxu0
  %v72 = vadd.f32 %v35, %v71
  %v73 = vpop.f32.mrf.mxu0
  %v74 = vadd.f32 %v35, %v73
  %75 = vmatmul.bf16.gmra.mxu0 %v54
  %v76 = vpop.f32.mrf.mxu0
  %v77 = vadd.f32 %v35, %v76
  %v78 = vpop.f32.mrf.mxu0
  %v79 = vadd.f32 %v35, %v78
  %80 = vmatmul.bf16.gmra.mxu0 %v57
  %v81 = vpop.f32.mrf.mxu0
  %v82 = vadd.f32 %v35, %v81
  %v83 = vpop.f32.mrf.mxu0
  %v84 = vadd.f32 %v35, %v83
  %85 = vmatmul.bf16.gmra.mxu0 %v60
  %v86 = vpop.f32.mrf.mxu0
  %v87 = vadd.f32 %v35, %v86
  %v88 = vpop.f32.mrf.mxu0
  %v89 = vadd.f32 %v35, %v88
  %90 = vdwg.mxu0
  %v91 = vpack.c.bf16 %v72, %v72
  %v92 = vpack.c.bf16 %v74, %v74
  %v93 = vpack.c.bf16 %v77, %v77
  %v94 = vpack.c.bf16 %v79, %v79
  %v95 = vpack.c.bf16 %v82, %v82
  %v96 = vpack.c.bf16 %v84, %v84
  %v97 = vpack.c.bf16 %v87, %v87
  %v98 = vpack.c.bf16 %v89, %v89
  %vm99 = vcmask 257024
  %100 = vst.msk [vmem:[%s3] sm:$0xf] %vm99, %v91
  %101 = vst.msk [vmem:[%s3 + $0x4] sm:$0xf] %vm99, %v92
  %102 = vst.msk [vmem:[%s3 + $0x8] sm:$0xf] %vm99, %v93
  %103 = vst.msk [vmem:[%s3 + $0xc] sm:$0xf] %vm99, %v94
  %104 = vst.msk [vmem:[%s3 + $0x10] sm:$0xf] %vm99, %v95
  %105 = vst.msk [vmem:[%s3 + $0x14] sm:$0xf] %vm99, %v96
  %106 = vst.msk [vmem:[%s3 + $0x18] sm:$0xf] %vm99, %v97
  %107 = vst.msk [vmem:[%s3 + $0x1c] sm:$0xf] %vm99, %v98
  %116 = vrot.lane.b32.xlu0 %v91, 96
  %v117 = vpop.permute.xlu0 %116
  %118 = vrot.lane.b32.xlu0 %v92, 96
  %v119 = vpop.permute.xlu0 %118
  %120 = vrot.lane.b32.xlu0 %v93, 96
  %v121 = vpop.permute.xlu0 %120
  %122 = vrot.lane.b32.xlu0 %v94, 96
  %v123 = vpop.permute.xlu0 %122
  %124 = vrot.lane.b32.xlu0 %v95, 96
  %v125 = vpop.permute.xlu0 %124
  %126 = vrot.lane.b32.xlu0 %v96, 96
  %v127 = vpop.permute.xlu0 %126
  %128 = vrot.lane.b32.xlu0 %v97, 96
  %v129 = vpop.permute.xlu0 %128
  %130 = vrot.lane.b32.xlu0 %v98, 96
  %v131 = vpop.permute.xlu0 %130
  %140 = vst.msk [vmem:[%s4] sm:$0xf] %vm99, %v117
  %141 = vst.msk [vmem:[%s4 + $0x4] sm:$0xf] %vm99, %v119
  %142 = vst.msk [vmem:[%s4 + $0x8] sm:$0xf] %vm99, %v121
  %143 = vst.msk [vmem:[%s4 + $0xc] sm:$0xf] %vm99, %v123
  %144 = vst.msk [vmem:[%s4 + $0x10] sm:$0xf] %vm99, %v125
  %145 = vst.msk [vmem:[%s4 + $0x14] sm:$0xf] %vm99, %v127
  %146 = vst.msk [vmem:[%s4 + $0x18] sm:$0xf] %vm99, %v129
  %147 = vst.msk [vmem:[%s4 + $0x1c] sm:$0xf] %vm99, %v131
  // Predicated region
  $region14: #{tpu_custom_call.1} parent=0 // pred_check
    _
  $region15: #{tpu_custom_call.1} parent=0 // pred_check_branch
    %149 = sbr.rel (0) target = $region17
  $region16: #{tpu_custom_call.1} parent=0 // pred_region
    _
  $region17: #{tpu_custom_call.1} parent=0 // pred_fallthru
    _
  // Predicated region
  $region18: #{tpu_custom_call.1} parent=0 // pred_check
    _
  $region19: #{tpu_custom_call.1} parent=0 // pred_check_branch
    %151 = sbr.rel (0) target = $region21
  $region20: #{tpu_custom_call.1} parent=0 // pred_region
    _
  $region21: #{tpu_custom_call.1} parent=0 // pred_fallthru
    _
  // Predicated region
  $region22: #{tpu_custom_call.1} parent=0 // pred_check
    _
  $region23: #{tpu_custom_call.1} parent=0 // pred_check_branch
    %153 = sbr.rel (0) target = $region25
  $region24: #{tpu_custom_call.1} parent=0 // pred_region
    _
  $region25: #{tpu_custom_call.1} parent=0 // pred_fallthru
    _
  // Predicated region
  $region26: #{tpu_custom_call.1} parent=0 // pred_check
    _
  $region27: #{tpu_custom_call.1} parent=0 // pred_check_branch
    %155 = sbr.rel (0) target = $region29
  $region28: #{tpu_custom_call.1} parent=0 // pred_region
    _
  $region29: #{tpu_custom_call.1} parent=0 // pred_fallthru
    _

</llo_original>
